<compile_context>
chip_gen: v7x
topology: tpu7x:2x2x1
jax: 0.10.0
libtpu: 0.0.40
codegen_flags: <defaults>
</compile_context>

<pallas_src>
import jax
import jax.numpy as jnp
from jax.experimental import pallas as pl
from jax.experimental.pallas import tpu as pltpu


def _coarse_up_kernel(x_ref, rep_ref, o_ref):
    # x_ref:   (rows_blk, w)        coarse rows (N/C/h folded into rows)
    # rep_ref: (w, S2)              binary lane-replication matrix (grid-invariant)
    # o_ref:   (rows_blk, r1 * S2)  lane-dense, contiguous output slab
    s2 = rep_ref.shape[1]
    r1 = o_ref.shape[-1] // s2

    x = x_ref[...]
    if x.dtype != rep_ref.dtype:
        x = x.astype(rep_ref.dtype)

    # Lane-direction replication: t[:, j] = x[:, j // r2]. Exact (binary matrix, one
    # nonzero per column). Accumulate in the compute dtype (bf16 stays bf16 end-to-end).
    t = jnp.dot(x, rep_ref[...], preferred_element_type=rep_ref.dtype)
    if t.dtype != o_ref.dtype:
        t = t.astype(o_ref.dtype)

    # Sublane-direction replication expressed as r1 contiguous lane-slabs of t.
    # (Output array (N*C*h, r1*S2) has the same linear layout as (N, C, S1, S2).)
    for q in range(r1):  # r1 is static and small
        o_ref[:, q * s2:(q + 1) * s2] = t


def _vmem_capacity_bytes():
    """Best-effort physical VMEM query; conservative (v7x per-TC) fallback."""
    try:
        info = pltpu.get_tpu_info()
        cap = getattr(info, "vmem_capacity_bytes", None)
        if cap:
            return int(cap)
    except Exception:
        pass
    return 64 * 1024 * 1024


def _pick_rows_block(total_rows, w, s2, r1, itemsize, max_block_bytes, vmem_limit_bytes):
    """Largest row-block that (a) divides total_rows, (b) is a multiple of the sublane
    tile for this dtype, (c) keeps the per-buffer output block under max_block_bytes and
    the double-buffered working set under the VMEM limit. The row axis is only split into
    >=2 blocks when it would otherwise be a single grid step (so v7x megacore can shard
    without needlessly halving blocks on single-TC v5e/v6e)."""
    sublane = max(8, 32 // itemsize)          # 8 for f32, 16 for bf16, 32 for int8/fp8
    out_row = r1 * s2 * itemsize
    in_row = w * itemsize
    t_row = s2 * itemsize
    margin = 4 * 1024 * 1024

    def fits(d):
        out_b = d * out_row
        # double-buffered output + double-buffered input + intermediate t
        budget = 2 * out_b + 2 * d * in_row + d * t_row
        return out_b <= max_block_bytes and budget <= vmem_limit_bytes - margin

    cands = [d for d in range(sublane, total_rows + 1, sublane)
             if total_rows % d == 0 and fits(d)]
    if not cands:
        return total_rows  # full extent is always a legal block along this dim
    best = max(cands)
    if total_rows // best >= 2:
        return best
    # Would be a single grid step: split once so the 2-TC megacore can shard and the
    # pipeline can overlap input DMA with output writeback.
    multi = [d for d in cands if total_rows // d >= 2]
    return max(multi) if multi else best


def coarse_up(x, S1, S2):
    """Nearest-neighbor coarse->fine upsampling. x: (N, C, h, w) -> (N, C, S1, S2)."""
    N, C, h, w = x.shape
    assert S1 % h == 0 and S2 % w == 0, "target size must be an integer multiple of input"
    r1, r2 = S1 // h, S2 // w

    if not jnp.issubdtype(x.dtype, jnp.floating):
        # TODO(synk): exact integer replication has no clean MXU path (f32 round trip is
        # lossy past 2^24); integer inputs take the plain-JAX copy path.
        return jnp.repeat(jnp.repeat(x, r1, axis=2), r2, axis=3)

    if x.dtype in (jnp.dtype(jnp.float32), jnp.dtype(jnp.bfloat16)):
        compute_dtype = x.dtype          # bf16 stays bf16 end-to-end (exact)
    else:
        compute_dtype = jnp.dtype(jnp.float32)   # e.g. f16: exact through f32

    # Binary lane-replication matrix rep[jc, j] = 1 iff jc == j // r2 — built once in the
    # wrapper, kept VMEM-resident via a constant index_map (no per-step iota/compare work).
    rep = (jnp.arange(w, dtype=jnp.int32)[:, None]
           == (jnp.arange(S2, dtype=jnp.int32) // r2)[None, :]).astype(compute_dtype)

    total_rows = N * C * h            # N folded into the row axis
    out_cols = r1 * S2
    itemsize = jnp.dtype(x.dtype).itemsize

    # Generation-aware block cap: HBM-write-bound kernel, so make blocks as large as the
    # scoped VMEM comfortably allows (bigger on 128-MiB v5e/v6e, smaller on 64-MiB v7x).
    if _vmem_capacity_bytes() >= 100 * 1024 * 1024:   # v5e / v6e (128 MiB physical)
        max_block_bytes = 12 * 1024 * 1024
        vmem_limit = 48 * 1024 * 1024
    else:                                             # v7x (64 MiB per TC)
        max_block_bytes = 6 * 1024 * 1024
        vmem_limit = 32 * 1024 * 1024

    rows_blk = _pick_rows_block(total_rows, w, S2, r1, itemsize,
                                max_block_bytes, vmem_limit)
    num_blocks = total_rows // rows_blk if total_rows % rows_blk == 0 else 1
    if num_blocks == 1:
        rows_blk = total_rows

    x2 = x.reshape(total_rows, w)  # free reshape (contiguous merge of N, C, h)

    cost = pl.CostEstimate(
        flops=2 * total_rows * w * S2,     # one tiny binary matmul per row block
        transcendentals=0,
        bytes_accessed=(x.size + N * C * S1 * S2) * itemsize
        + rep.size * jnp.dtype(compute_dtype).itemsize,
    )

    out2 = pl.pallas_call(
        _coarse_up_kernel,
        out_shape=jax.ShapeDtypeStruct((total_rows, out_cols), x.dtype),
        grid=(num_blocks,),
        in_specs=[
            pl.BlockSpec((rows_blk, w), lambda r: (r, 0)),
            pl.BlockSpec((w, S2), lambda r: (0, 0)),   # grid-invariant constant
        ],
        out_specs=pl.BlockSpec((rows_blk, out_cols), lambda r: (r, 0)),
        compiler_params=pltpu.CompilerParams(
            dimension_semantics=("parallel",),
            vmem_limit_bytes=vmem_limit,
        ),
        cost_estimate=cost,
    )(x2, rep)

    # (N*C*h, r1*S2) has exactly the same linear layout as (N, C, S1, S2):
    # row ((n*C + c)*h + i), column (q*S2 + j)  <->  (n, c, i*r1 + q, j).  Free reshape.
    return out2.reshape(N, C, S1, S2)


class CoarseUp:
    """JAX port of the PyTorch `coarseUp` module (no learnable parameters)."""

    def __init__(self, S1, S2):
        self.S1 = S1
        self.S2 = S2

    def __call__(self, x):
        return coarse_up(x, self.S1, self.S2)


if __name__ == "__main__":
    # n1 = fine-grid resolution (hipassF.shape[1]); chosen lane-dense but small.
    n1 = 128
    N, C, h, w = 2, 4, 16, 16  # coarse input; upsampled to (n1, n1), r1 = r2 = 8

    key = jax.random.PRNGKey(0)
    x = jax.random.normal(key, (N, C, h, w), dtype=jnp.float32)

    model = CoarseUp(S1=n1, S2=n1)
    out = jax.block_until_ready(model(x))

    # Reference check (plain JAX nearest-neighbor replication).
    ref = jnp.repeat(jnp.repeat(x, n1 // h, axis=2), n1 // w, axis=3)
    assert out.shape == (N, C, n1, n1)
    assert jnp.allclose(out, ref, atol=1e-6), "mismatch vs reference upsampling (f32)"

    # bf16 I/O path: matmul accumulates and stores in bf16 (no f32 round trip); exact.
    xb = x.astype(jnp.bfloat16)
    outb = jax.block_until_ready(model(xb))
    refb = jnp.repeat(jnp.repeat(xb, n1 // h, axis=2), n1 // w, axis=3)
    assert outb.dtype == jnp.bfloat16
    assert jnp.allclose(outb.astype(jnp.float32), refb.astype(jnp.float32)), \
        "mismatch vs reference upsampling (bf16)"

    print("KERNEL_OK")
</pallas_src>

<mosaic_0001>
module attributes {stable_mosaic.version = 11 : i64} {
  func.func @_coarse_up_kernel(%arg0: i32, %arg1: memref<64x16xf32, #tpu.memory_space<vmem>>, %arg2: memref<16x128xf32, #tpu.memory_space<vmem>>, %arg3: memref<64x1024xf32, #tpu.memory_space<vmem>>) attributes {dimension_semantics = [#tpu.dimension_semantics<parallel>], iteration_bounds = array<i64: 2>, scalar_prefetch = 0 : i64, scratch_operands = 0 : i64, tpu.core_type = #tpu.core_type<tc>, window_params = [{transform_indices = @transform_0, window_bounds = array<i64: 64, 16>}, {pipeline_mode = #tpu.pipeline_mode<synchronous>, transform_indices = @transform_1, window_bounds = array<i64: 16, 128>}, {transform_indices = @transform_2, window_bounds = array<i64: 64, 1024>}]} {
    %c0 = arith.constant 0 : index
    %c0_0 = arith.constant 0 : index
    %0 = vector.load %arg1[%c0, %c0_0] : memref<64x16xf32, #tpu.memory_space<vmem>>, vector<64x16xf32>
    %c0_1 = arith.constant 0 : index
    %c0_2 = arith.constant 0 : index
    %1 = vector.load %arg2[%c0_1, %c0_2] : memref<16x128xf32, #tpu.memory_space<vmem>>, vector<16x128xf32>
    %cst = arith.constant dense<0.000000e+00> : vector<64x128xf32>
    %2 = tpu.matmul %0, %1, %cst {dimension_numbers = #tpu.dot_dimension_numbers<[1], [0], [0], [1], [0, 0, 1, 1], [], []>} : vector<64x16xf32>, vector<16x128xf32>, vector<64x128xf32> -> vector<64x128xf32>
    %c0_3 = arith.constant 0 : index
    %c0_4 = arith.constant 0 : index
    %3 = vector.load %arg3[%c0_3, %c0_4] : memref<64x1024xf32, #tpu.memory_space<vmem>>, vector<64x128xf32>
    tpu.vector_store %arg3[%c0_3, %c0_4], %2 {strides = array<i32>} : memref<64x1024xf32, #tpu.memory_space<vmem>>, vector<64x128xf32>,
    %c0_5 = arith.constant 0 : index
    %c128 = arith.constant 128 : index
    %4 = vector.load %arg3[%c0_5, %c128] : memref<64x1024xf32, #tpu.memory_space<vmem>>, vector<64x128xf32>
    tpu.vector_store %arg3[%c0_5, %c128], %2 {strides = array<i32>} : memref<64x1024xf32, #tpu.memory_space<vmem>>, vector<64x128xf32>,
    %c0_6 = arith.constant 0 : index
    %c256 = arith.constant 256 : index
    %5 = vector.load %arg3[%c0_6, %c256] : memref<64x1024xf32, #tpu.memory_space<vmem>>, vector<64x128xf32>
    tpu.vector_store %arg3[%c0_6, %c256], %2 {strides = array<i32>} : memref<64x1024xf32, #tpu.memory_space<vmem>>, vector<64x128xf32>,
    %c0_7 = arith.constant 0 : index
    %c384 = arith.constant 384 : index
    %6 = vector.load %arg3[%c0_7, %c384] : memref<64x1024xf32, #tpu.memory_space<vmem>>, vector<64x128xf32>
    tpu.vector_store %arg3[%c0_7, %c384], %2 {strides = array<i32>} : memref<64x1024xf32, #tpu.memory_space<vmem>>, vector<64x128xf32>,
    %c0_8 = arith.constant 0 : index
    %c512 = arith.constant 512 : index
    %7 = vector.load %arg3[%c0_8, %c512] : memref<64x1024xf32, #tpu.memory_space<vmem>>, vector<64x128xf32>
    tpu.vector_store %arg3[%c0_8, %c512], %2 {strides = array<i32>} : memref<64x1024xf32, #tpu.memory_space<vmem>>, vector<64x128xf32>,
    %c0_9 = arith.constant 0 : index
    %c640 = arith.constant 640 : index
    %8 = vector.load %arg3[%c0_9, %c640] : memref<64x1024xf32, #tpu.memory_space<vmem>>, vector<64x128xf32>
    tpu.vector_store %arg3[%c0_9, %c640], %2 {strides = array<i32>} : memref<64x1024xf32, #tpu.memory_space<vmem>>, vector<64x128xf32>,
    %c0_10 = arith.constant 0 : index
    %c768 = arith.constant 768 : index
    %9 = vector.load %arg3[%c0_10, %c768] : memref<64x1024xf32, #tpu.memory_space<vmem>>, vector<64x128xf32>
    tpu.vector_store %arg3[%c0_10, %c768], %2 {strides = array<i32>} : memref<64x1024xf32, #tpu.memory_space<vmem>>, vector<64x128xf32>,
    %c0_11 = arith.constant 0 : index
    %c896 = arith.constant 896 : index
    %10 = vector.load %arg3[%c0_11, %c896] : memref<64x1024xf32, #tpu.memory_space<vmem>>, vector<64x128xf32>
    tpu.vector_store %arg3[%c0_11, %c896], %2 {strides = array<i32>} : memref<64x1024xf32, #tpu.memory_space<vmem>>, vector<64x128xf32>,
    return
  }
  func.func @transform_0(%arg0: i32) -> (i32, i32) {
    %c0_i32 = arith.constant 0 : i32
    %c0_i32_0 = arith.constant 0 : i32
    return %arg0, %c0_i32 : i32, i32
  }
  func.func @transform_1(%arg0: i32) -> (i32, i32) {
    %c0_i32 = arith.constant 0 : i32
    %c0_i32_0 = arith.constant 0 : i32
    %c0_i32_1 = arith.constant 0 : i32
    return %c0_i32, %c0_i32_0 : i32, i32
  }
  func.func @transform_2(%arg0: i32) -> (i32, i32) {
    %c0_i32 = arith.constant 0 : i32
    %c0_i32_0 = arith.constant 0 : i32
    return %arg0, %c0_i32 : i32, i32
  }
}

</mosaic_0001>

<llo_original>
// kernel: tpu_custom_call.1
$region0: #{tpu_custom_call.1}
  #allocation0 [shape = 'u32[]', space=smem, size = 0x4, offset = 0x4, fixed_abs, tag = 'smem constant byte address 0x4 - core index']
  #allocation1 [shape = 'u32[144,128]{1,0:T(1,128)}', space=vmem, size = 0x12000, scoped, tag = 'internal scratch']
  %s0 = inlined_call_operand.vmem [shape: f32[128,16], index: 0, kind: input, shape index: {}]
  %s1 = inlined_call_operand.vmem [shape: f32[16,128], index: 1, kind: input, shape index: {}]
  %s2 = inlined_call_operand.hbm [shape: f32[128,1024], index: 2, kind: output, shape index: {}]
  %s3 = sld [smem:[#allocation0]]
  $region41: #{tpu_custom_call.1} parent=0
    _
  %s5 = ssub.s32 1, %s3
  %s6 = scalar_select 0, %s5, %s3
  $region1: #{tpu_custom_call.1} parent=0
    #allocation2 [shape = 'u8[524288]{0}', space=vmem, size = 0x80000, scoped, tag = 'output window, operand 0']
    #allocation3 [shape = 's32[2]{0}', space=sflag, size = 0x8, scoped, tag = 'scoped memory for tpu_custom_call.1']
    %7 = vsyncpa [#allocation3], 0
    %s8 = scalar_lea.sflag [#allocation3], 1
    %9 = vsyncpa %s8, 0
    loop: start=0, step=1, limit=4
    $region2: #{tpu_custom_call.1} parent=1 // loop_pre_header
      _
    $region3: #{tpu_custom_call.1} parent=1 // loop_header
      %s11 = sphi 0, %s15
      %p12 = scmp.ge.s32.totalorder %s11, 4
      %s21 = sphi 0, %s23
      %s24 = sphi 0, %s21
      %s25 = sphi 0, %s24
      %s41 = sphi 0, %s25
      %s45 = sphi 0, %s45
      %s47 = sphi 0, %s45
      %s48 = sphi 0, %s47
      %s62 = sphi 0, %s48
      %s68 = sphi 0, %s70
      %s71 = sphi 0, %s68
      %s72 = sphi 0, %s71
      %s88 = sphi 0, %s72
    $region4: #{tpu_custom_call.1} parent=1 // loop_header_branch
      %14 = sbr.rel (%p12) target = $region8
    $region5: #{tpu_custom_call.1} parent=1 // loop_body
      %s16 = ssub.s32 %s11, 1
      %s17 = ssub.s32 %s11, 2
      %s18 = sadd.s32 %s11, 1
      %s19 = ssub.s32 %s11, %s18
      %p20 = scmp.eq.s32.totalorder %s19, 0
      %s22 = sadd.s32 %s21, 1
      %s23 = scalar_select %p20, %s21, %s22
      %p26 = pneg %p20
      %p27 = scmp.eq.s32.totalorder %s11, 1
      %p28 = por %p26, %p27
      %p29 = scmp.ne.s32.totalorder %s21, %s24
      %p30 = scmp.eq.s32.totalorder %s11, 0
      %p31 = por %p29, %p30
      %p32 = scmp.ne.s32.totalorder %s21, %s24
      %p33 = scmp.eq.s32.totalorder %s16, 1
      %p34 = por %p32, %p33
      %p35 = scmp.ne.s32.totalorder %s24, %s25
      %p36 = scmp.eq.s32.totalorder %s16, 0
      %p37 = por %p35, %p36
      %p38 = scmp.ne.s32.totalorder %s24, %s25
      %p39 = scmp.eq.s32.totalorder %s17, 1
      %p40 = por %p38, %p39
      %p42 = scmp.ne.s32.totalorder %s25, %s41
      %p43 = scmp.eq.s32.totalorder %s17, 0
      %p44 = por %p42, %p43
      %s46 = sadd.s32 %s45, 1
      %p49 = scmp.eq.s32.totalorder %s11, 1
      %p50 = scmp.ne.s32.totalorder %s45, %s47
      %p51 = scmp.eq.s32.totalorder %s11, 0
      %p52 = por %p50, %p51
      %p53 = scmp.ne.s32.totalorder %s45, %s47
      %p54 = scmp.eq.s32.totalorder %s16, 1
      %p55 = por %p53, %p54
      %p56 = scmp.ne.s32.totalorder %s47, %s48
      %p57 = scmp.eq.s32.totalorder %s16, 0
      %p58 = por %p56, %p57
      %p59 = scmp.ne.s32.totalorder %s47, %s48
      %p60 = scmp.eq.s32.totalorder %s17, 1
      %p61 = por %p59, %p60
      %p63 = scmp.ne.s32.totalorder %s48, %s62
      %p64 = scmp.eq.s32.totalorder %s17, 0
      %p65 = por %p63, %p64
      %s66 = ssub.s32 %s11, %s18
      %p67 = scmp.eq.s32.totalorder %s66, 0
      %s69 = sadd.s32 %s68, 1
      %s70 = scalar_select %p67, %s68, %s69
      %p73 = pneg %p67
      %p74 = scmp.eq.s32.totalorder %s11, 1
      %p75 = por %p73, %p74
      %p76 = scmp.ne.s32.totalorder %s68, %s71
      %p77 = scmp.eq.s32.totalorder %s11, 0
      %p78 = por %p76, %p77
      %p79 = scmp.ne.s32.totalorder %s68, %s71
      %p80 = scmp.eq.s32.totalorder %s16, 1
      %p81 = por %p79, %p80
      %p82 = scmp.ne.s32.totalorder %s71, %s72
      %p83 = scmp.eq.s32.totalorder %s16, 0
      %p84 = por %p82, %p83
      %p85 = scmp.ne.s32.totalorder %s71, %s72
      %p86 = scmp.eq.s32.totalorder %s17, 1
      %p87 = por %p85, %p86
      %p89 = scmp.ne.s32.totalorder %s72, %s88
      %p90 = scmp.eq.s32.totalorder %s17, 0
      %p91 = por %p89, %p90
      %p92 = scmp.le.s32.totalorder 1, %s11
      %p93 = scmp.lt.s32.totalorder %s11, 3
      %p94 = pnand %p92, %p93
      %p95 = pneg %p94
      // Predicated region
      $region9: #{tpu_custom_call.1} parent=5 // pred_check
        _
      $region10: #{tpu_custom_call.1} parent=5 // pred_check_branch
        %97 = sbr.rel (%p94) target = $region12
      $region11: #{tpu_custom_call.1} parent=5 // pred_region
        %s98 = ssub.s32 %s11, 1
        // Predicated region
        $region13: #{tpu_custom_call.1} parent=11 // pred_check
          %p99 = pneg %p58
        $region14: #{tpu_custom_call.1} parent=11 // pred_check_branch
          %101 = sbr.rel (%p99) target = $region16
        $region15: #{tpu_custom_call.1} parent=11 // pred_region
          _
        $region16: #{tpu_custom_call.1} parent=11 // pred_fallthru
          _
      $region12: #{tpu_custom_call.1} parent=5 // pred_fallthru
        _
      %p102 = scmp.lt.s32.totalorder %s11, 2
      // Predicated region
      $region17: #{tpu_custom_call.1} parent=5 // pred_check
        %p103 = pneg %p102
      $region18: #{tpu_custom_call.1} parent=5 // pred_check_branch
        %105 = sbr.rel (%p103) target = $region20
      $region19: #{tpu_custom_call.1} parent=5 // pred_region
        // Predicated region
        $region21: #{tpu_custom_call.1} parent=19 // pred_check
          %p106 = pneg %p31
        $region22: #{tpu_custom_call.1} parent=19 // pred_check_branch
          %108 = sbr.rel (%p106) target = $region24
        $region23: #{tpu_custom_call.1} parent=19 // pred_region
          %s109 = smul.u32 8, %s11
          %p110 = scmp.lt.s32.totalorder %s109, 15
          %s111 = scalar_select %p110, %s109, 15
          %s112 = smul.addr %s111, 8
          %s113 = scalar_lea.vmem %s0, %s112
          %s114 = smul.u32 8, %s11
        $region24: #{tpu_custom_call.1} parent=19 // pred_fallthru
          _
      $region20: #{tpu_custom_call.1} parent=5 // pred_fallthru
        _
      %p115 = scmp.le.s32.totalorder 1, %s11
      %p116 = scmp.lt.s32.totalorder %s11, 3
      %p117 = pnand %p115, %p116
      %p118 = pneg %p117
      // Predicated region
      $region25: #{tpu_custom_call.1} parent=5 // pred_check
        _
      $region26: #{tpu_custom_call.1} parent=5 // pred_check_branch
        %120 = sbr.rel (%p117) target = $region28
      $region27: #{tpu_custom_call.1} parent=5 // pred_region
        %s121 = ssub.s32 %s11, 1
        %s122 = smul.u32 8, %s16
        %p123 = scmp.lt.s32.totalorder %s122, 15
        %s124 = scalar_select %p123, %s122, 15
        %s125 = smul.addr %s124, 8
        %s126 = scalar_lea.vmem %s0, %s125
        %p127 = pneg %p37
        %p128 = pneg %p34
        %p129 = pneg %p58
        %p130 = pneg %p55
        %p131 = pneg %p84
        %p132 = pneg %p81
        %s133 = sand.u32 %s71, 1
        %s134 = scalar_lea.sflag [#allocation3], %s133
        %s135 = sand.u32 %s71, 1
        %s136 = smul.addr %s135, 512
        %s137 = scalar_lea.vmem [#allocation2], %s136
        %s138 = smul.u32 8, %s16
        %p139 = scmp.lt.s32.totalorder %s138, 15
        %s140 = scalar_select %p139, %s138, 15
        %s141 = smul.addr %s140, 8
        %s142 = scalar_lea.vmem %s0, %s141
        %s143 = smul.u32 8, %s16
        %s144 = smul.u32 8, %s16
        %v145 = vld [vmem:[%s142] sm:$0xff]
        %v146 = vld [vmem:[%s142 + $0x8] sm:$0xff]
        %v147 = vld [vmem:[%s142 + $0x10] sm:$0xff]
        %v148 = vld [vmem:[%s142 + $0x18] sm:$0xff]
        %v149 = vld [vmem:[%s142 + $0x20] sm:$0xff]
        %v150 = vld [vmem:[%s142 + $0x28] sm:$0xff]
        %v151 = vld [vmem:[%s142 + $0x30] sm:$0xff]
        %v152 = vld [vmem:[%s142 + $0x38] sm:$0xff]
        %v153 = vld [vmem:[%s1] sm:$0xff]
        %v154 = vld [vmem:[%s1 + $0x8] sm:$0xff]
        %vm155 = vcmask 130048
        %v157 = vsel %vm155, %v145, 0
        %v160 = vsel %vm155, %v146, 0
        %v163 = vsel %vm155, %v147, 0
        %v166 = vsel %vm155, %v148, 0
        %v169 = vsel %vm155, %v149, 0
        %v172 = vsel %vm155, %v150, 0
        %v175 = vsel %vm155, %v151, 0
        %v178 = vsel %vm155, %v152, 0
        %180 = vmatprep.subr.mxu0 0.0
        %181 = vmatpush1.msra.mxu0 %v153
        %182 = vmatprep.subr.mxu0 0.0
        %183 = vmatpush1.msra.mxu0 %v154
        %184 = vmatprep.subr.mxu0 0.0
        %185 = vmatpush1.msra.mxu0 0.0
        %186 = vmatprep.subr.mxu0 0.0
        %187 = vmatpush1.msra.mxu0 0.0
        %188 = vmatprep.subr.mxu0 0.0
        %189 = vmatpush1.msra.mxu0 0.0
        %190 = vmatprep.subr.mxu0 0.0
        %191 = vmatpush1.msra.mxu0 0.0
        %192 = vmatprep.subr.mxu0 0.0
        %193 = vmatpush1.msra.mxu0 0.0
        %194 = vmatprep.subr.mxu0 0.0
        %195 = vmatpush1.msra.mxu0 0.0
        %196 = vmatprep.subr.mxu0 0.0
        %197 = vmatpush1.msra.mxu0 0.0
        %198 = vmatprep.subr.mxu0 0.0
        %199 = vmatpush1.msra.mxu0 0.0
        %200 = vmatprep.subr.mxu0 0.0
        %201 = vmatpush1.msra.mxu0 0.0
        %202 = vmatprep.subr.mxu0 0.0
        %203 = vmatpush1.msra.mxu0 0.0
        %204 = vmatprep.subr.mxu0 0.0
        %205 = vmatpush1.msra.mxu0 0.0
        %206 = vmatprep.subr.mxu0 0.0
        %207 = vmatpush1.msra.mxu0 0.0
        %208 = vmatprep.subr.mxu0 0.0
        %209 = vmatpush1.msra.mxu0 0.0
        %210 = vmatprep.subr.mxu0 0.0
        %211 = vmatpush1.msra.mxu0 0.0
        %212 = vmatprep.subr.mxu0 0.0
        %213 = vmatpush1.msra.mxu0 0.0
        %214 = vmatprep.subr.mxu0 0.0
        %215 = vmatpush1.msra.mxu0 0.0
        %216 = vmatprep.subr.mxu0 0.0
        %217 = vmatpush1.msra.mxu0 0.0
        %218 = vmatprep.subr.mxu0 0.0
        %219 = vmatpush1.msra.mxu0 0.0
        %220 = vmatprep.subr.mxu0 0.0
        %221 = vmatpush1.msra.mxu0 0.0
        %222 = vmatprep.subr.mxu0 0.0
        %223 = vmatpush1.msra.mxu0 0.0
        %224 = vmatprep.subr.mxu0 0.0
        %225 = vmatpush1.msra.mxu0 0.0
        %226 = vmatprep.subr.mxu0 0.0
        %227 = vmatpush1.msra.mxu0 0.0
        %228 = vmatprep.subr.mxu0 0.0
        %229 = vmatpush1.msra.mxu0 0.0
        %230 = vmatprep.subr.mxu0 0.0
        %231 = vmatpush1.msra.mxu0 0.0
        %232 = vmatprep.subr.mxu0 0.0
        %233 = vmatpush1.msra.mxu0 0.0
        %234 = vmatprep.subr.mxu0 0.0
        %235 = vmatpush1.msra.mxu0 0.0
        %236 = vmatprep.subr.mxu0 0.0
        %237 = vmatpush1.msra.mxu0 0.0
        %238 = vmatprep.subr.mxu0 0.0
        %239 = vmatpush1.msra.mxu0 0.0
        %240 = vmatprep.subr.mxu0 0.0
        %241 = vmatpush1.msra.mxu0 0.0
        %242 = vmatprep.subr.mxu0 0.0
        %243 = vmatpush1.msra.mxu0 0.0
        %244 = vmatprep.mubr.f32.mxu0 0.0
        %245 = vmatmul.mubr.f32.gmra.mrb[0].mxu0 %v157
        %v246 = vpop.f32.mrb[0].mxu0
        %v247 = vadd.f32 0.0, %v246
        %v248 = vpop.f32.mrb[0].mxu0
        %249 = vmatprep.mubr.f32.mxu0 0.0
        %250 = vmatmul.mubr.f32.gmra.mrb[0].mxu0 %v160
        %v251 = vpop.f32.mrb[0].mxu0
        %v252 = vadd.f32 0.0, %v251
        %v253 = vpop.f32.mrb[0].mxu0
        %254 = vmatprep.mubr.f32.mxu0 0.0
        %255 = vmatmul.mubr.f32.gmra.mrb[0].mxu0 %v163
        %v256 = vpop.f32.mrb[0].mxu0
        %v257 = vadd.f32 0.0, %v256
        %v258 = vpop.f32.mrb[0].mxu0
        %259 = vmatprep.mubr.f32.mxu0 0.0
        %260 = vmatmul.mubr.f32.gmra.mrb[0].mxu0 %v166
        %v261 = vpop.f32.mrb[0].mxu0
        %v262 = vadd.f32 0.0, %v261
        %v263 = vpop.f32.mrb[0].mxu0
        %264 = vmatprep.mubr.f32.mxu0 0.0
        %265 = vmatmul.mubr.f32.gmra.mrb[0].mxu0 %v169
        %v266 = vpop.f32.mrb[0].mxu0
        %v267 = vadd.f32 0.0, %v266
        %v268 = vpop.f32.mrb[0].mxu0
        %269 = vmatprep.mubr.f32.mxu0 0.0
        %270 = vmatmul.mubr.f32.gmra.mrb[0].mxu0 %v172
        %v271 = vpop.f32.mrb[0].mxu0
        %v272 = vadd.f32 0.0, %v271
        %v273 = vpop.f32.mrb[0].mxu0
        %274 = vmatprep.mubr.f32.mxu0 0.0
        %275 = vmatmul.mubr.f32.gmra.mrb[0].mxu0 %v175
        %v276 = vpop.f32.mrb[0].mxu0
        %v277 = vadd.f32 0.0, %v276
        %v278 = vpop.f32.mrb[0].mxu0
        %279 = vmatprep.mubr.f32.mxu0 0.0
        %280 = vmatmul.mubr.f32.gmra.mrb[0].mxu0 %v178
        %v281 = vpop.f32.mrb[0].mxu0
        %v282 = vadd.f32 0.0, %v281
        %v283 = vpop.f32.mrb[0].mxu0
        %284 = vdwg.mxu0
        %285 = vst [vmem:[%s137] sm:$0xff] %v247
        %286 = vst [vmem:[%s137 + $0x40] sm:$0xff] %v252
        %287 = vst [vmem:[%s137 + $0x80] sm:$0xff] %v257
        %288 = vst [vmem:[%s137 + $0xc0] sm:$0xff] %v262
        %289 = vst [vmem:[%s137 + $0x100] sm:$0xff] %v267
        %290 = vst [vmem:[%s137 + $0x140] sm:$0xff] %v272
        %291 = vst [vmem:[%s137 + $0x180] sm:$0xff] %v277
        %292 = vst [vmem:[%s137 + $0x1c0] sm:$0xff] %v282
        %293 = vst [vmem:[%s137 + $0x8] sm:$0xff] %v247
        %294 = vst [vmem:[%s137 + $0x48] sm:$0xff] %v252
        %295 = vst [vmem:[%s137 + $0x88] sm:$0xff] %v257
        %296 = vst [vmem:[%s137 + $0xc8] sm:$0xff] %v262
        %297 = vst [vmem:[%s137 + $0x108] sm:$0xff] %v267
        %298 = vst [vmem:[%s137 + $0x148] sm:$0xff] %v272
        %299 = vst [vmem:[%s137 + $0x188] sm:$0xff] %v277
        %300 = vst [vmem:[%s137 + $0x1c8] sm:$0xff] %v282
        %301 = vst [vmem:[%s137 + $0x10] sm:$0xff] %v247
        %302 = vst [vmem:[%s137 + $0x50] sm:$0xff] %v252
        %303 = vst [vmem:[%s137 + $0x90] sm:$0xff] %v257
        %304 = vst [vmem:[%s137 + $0xd0] sm:$0xff] %v262
        %305 = vst [vmem:[%s137 + $0x110] sm:$0xff] %v267
        %306 = vst [vmem:[%s137 + $0x150] sm:$0xff] %v272
        %307 = vst [vmem:[%s137 + $0x190] sm:$0xff] %v277
        %308 = vst [vmem:[%s137 + $0x1d0] sm:$0xff] %v282
        %309 = vst [vmem:[%s137 + $0x18] sm:$0xff] %v247
        %310 = vst [vmem:[%s137 + $0x58] sm:$0xff] %v252
        %311 = vst [vmem:[%s137 + $0x98] sm:$0xff] %v257
        %312 = vst [vmem:[%s137 + $0xd8] sm:$0xff] %v262
        %313 = vst [vmem:[%s137 + $0x118] sm:$0xff] %v267
        %314 = vst [vmem:[%s137 + $0x158] sm:$0xff] %v272
        %315 = vst [vmem:[%s137 + $0x198] sm:$0xff] %v277
        %316 = vst [vmem:[%s137 + $0x1d8] sm:$0xff] %v282
        %317 = vst [vmem:[%s137 + $0x20] sm:$0xff] %v247
        %318 = vst [vmem:[%s137 + $0x60] sm:$0xff] %v252
        %319 = vst [vmem:[%s137 + $0xa0] sm:$0xff] %v257
        %320 = vst [vmem:[%s137 + $0xe0] sm:$0xff] %v262
        %321 = vst [vmem:[%s137 + $0x120] sm:$0xff] %v267
        %322 = vst [vmem:[%s137 + $0x160] sm:$0xff] %v272
        %323 = vst [vmem:[%s137 + $0x1a0] sm:$0xff] %v277
        %324 = vst [vmem:[%s137 + $0x1e0] sm:$0xff] %v282
        %325 = vst [vmem:[%s137 + $0x28] sm:$0xff] %v247
        %326 = vst [vmem:[%s137 + $0x68] sm:$0xff] %v252
        %327 = vst [vmem:[%s137 + $0xa8] sm:$0xff] %v257
        %328 = vst [vmem:[%s137 + $0xe8] sm:$0xff] %v262
        %329 = vst [vmem:[%s137 + $0x128] sm:$0xff] %v267
        %330 = vst [vmem:[%s137 + $0x168] sm:$0xff] %v272
        %331 = vst [vmem:[%s137 + $0x1a8] sm:$0xff] %v277
        %332 = vst [vmem:[%s137 + $0x1e8] sm:$0xff] %v282
        %333 = vst [vmem:[%s137 + $0x30] sm:$0xff] %v247
        %334 = vst [vmem:[%s137 + $0x70] sm:$0xff] %v252
        %335 = vst [vmem:[%s137 + $0xb0] sm:$0xff] %v257
        %336 = vst [vmem:[%s137 + $0xf0] sm:$0xff] %v262
        %337 = vst [vmem:[%s137 + $0x130] sm:$0xff] %v267
        %338 = vst [vmem:[%s137 + $0x170] sm:$0xff] %v272
        %339 = vst [vmem:[%s137 + $0x1b0] sm:$0xff] %v277
        %340 = vst [vmem:[%s137 + $0x1f0] sm:$0xff] %v282
        %341 = vst [vmem:[%s137 + $0x38] sm:$0xff] %v247
        %342 = vst [vmem:[%s137 + $0x78] sm:$0xff] %v252
        %343 = vst [vmem:[%s137 + $0xb8] sm:$0xff] %v257
        %344 = vst [vmem:[%s137 + $0xf8] sm:$0xff] %v262
        %345 = vst [vmem:[%s137 + $0x138] sm:$0xff] %v267
        %346 = vst [vmem:[%s137 + $0x178] sm:$0xff] %v272
        %347 = vst [vmem:[%s137 + $0x1b8] sm:$0xff] %v277
        %348 = vst [vmem:[%s137 + $0x1f8] sm:$0xff] %v282
        %s349 = sand.u32 %s71, 1
        %s350 = scalar_lea.sflag [#allocation3], %s349
        %s351 = sand.u32 %s71, 1
        %s352 = smul.addr %s351, 512
        %s353 = scalar_lea.vmem [#allocation2], %s352
        // Predicated region
        $region29: #{tpu_custom_call.1} parent=27 // pred_check
          %p354 = pneg %p81
        $region30: #{tpu_custom_call.1} parent=27 // pred_check_branch
          %356 = sbr.rel (%p354) target = $region32
        $region31: #{tpu_custom_call.1} parent=27 // pred_region
          %s357 = smul.u32 8, %s16
          %s359 = ssub.s32 8192, 8192
          %360 = vsyncadd %s350, %s359
          %s361 = smul.addr %s357, 8
          %s362 = smul.addr %s361, 128
          %s363 = scalar_lea.hbm %s2, %s362
          %s364 = sshll.u32 %s353, 4
          %s365 = int_to_ptr.vmem [resolvable:$true] %s364
          %370 = dma.vmem_to_hbm [thread:$0]  %s365, 8192, %s363, %s350, 1024, 1024, 64
        $region32: #{tpu_custom_call.1} parent=27 // pred_fallthru
          _
      $region28: #{tpu_custom_call.1} parent=5 // pred_fallthru
        _
      %p371 = scmp.le.s32.totalorder 2, %s11
      // Predicated region
      $region33: #{tpu_custom_call.1} parent=5 // pred_check
        %p372 = pneg %p371
      $region34: #{tpu_custom_call.1} parent=5 // pred_check_branch
        %374 = sbr.rel (%p372) target = $region36
      $region35: #{tpu_custom_call.1} parent=5 // pred_region
        %s375 = ssub.s32 %s11, 2
        // Predicated region
        $region37: #{tpu_custom_call.1} parent=35 // pred_check
          %p376 = pneg %p87
        $region38: #{tpu_custom_call.1} parent=35 // pred_check_branch
          %378 = sbr.rel (%p376) target = $region40
        $region39: #{tpu_custom_call.1} parent=35 // pred_region
          %s379 = sand.u32 %s72, 1
          %s380 = scalar_lea.sflag [#allocation3], %s379
          %s381 = sand.u32 %s72, 1
          %s382 = smul.addr %s381, 512
          %s383 = scalar_lea.vmem [#allocation2], %s382
          %384 = dma.done %s380, 8192
        $region40: #{tpu_custom_call.1} parent=35 // pred_fallthru
          _
      $region36: #{tpu_custom_call.1} parent=5 // pred_fallthru
        _
    $region6: #{tpu_custom_call.1} parent=1 // loop_footer
      %s15 = sadd.s32 1, %s11
    $region7: #{tpu_custom_call.1} parent=1 // loop_footer_branch
      %10 = sbr.rel target = $region3
    $region8: #{tpu_custom_call.1} parent=1 // loop_exit
      _
    %385 = vsyncpa [#allocation3], 1
    %s386 = scalar_lea.sflag [#allocation3], 1
    %387 = vsyncpa %s386, 1

</llo_original>
